<compile_context>
chip_gen: v7x
topology: tpu7x:2x2x1
jax: 0.10.0
libtpu: 0.0.40
codegen_flags: <defaults>
</compile_context>

<pallas_src>
import math

import jax
import jax.numpy as jnp
from jax.experimental import pallas as pl
from jax.experimental.pallas import tpu as pltpu


def _attention_kernel(qkv_ref, o_ref):
    # qkv_ref: (TB, 3*C, D) fused q/k/v block.  o_ref: (TB, C, D).
    C = o_ref.shape[1]
    D = o_ref.shape[2]

    # Static slices of the fused block (no wrapper-side HBM slicing).
    q = qkv_ref[:, 0 * C:1 * C, :]          # (TB, C, D)
    k = qkv_ref[:, 1 * C:2 * C, :]          # (TB, C, D)
    v = qkv_ref[:, 2 * C:3 * C, :]          # (TB, C, D)

    # Fold the 1/sqrt(D) scale into q (C*D multiplies instead of C*C).
    scale = 1.0 / math.sqrt(D)
    qs = q * scale

    # score[b, i, j] = sum_d qs[b, i, d] * k[b, j, d]
    # bf16 MXU operands, f32 accumulation; contract last axes (no k transpose).
    s = jax.lax.dot_general(
        qs.astype(jnp.bfloat16), k.astype(jnp.bfloat16),
        dimension_numbers=(((2,), (2,)), ((0,), (0,))),
        preferred_element_type=jnp.float32)            # (TB, C, C) f32

    # Numerically-stable softmax; keep p UN-normalized and scale the output.
    m = jnp.max(s, axis=-1, keepdims=True)
    p = jnp.exp(s - m)                                  # f32 (EUP)
    denom = jnp.sum(p, axis=-1, keepdims=True)          # (TB, C, 1)

    # out[b, i, d] = sum_j p[b, i, j] * v[b, j, d]  — bf16 operands, f32 acc.
    out = jax.lax.dot_general(
        p.astype(jnp.bfloat16), v.astype(jnp.bfloat16),
        dimension_numbers=(((2,), (1,)), ((0,), (0,))),
        preferred_element_type=jnp.float32)             # (TB, C, D) f32

    # Approx reciprocal -> EUP slot (cheap, O(TB*C) elements), applied to the
    # (C, D) output rather than normalizing the (C, C) probability matrix.
    inv = pl.reciprocal(denom, approx=True)
    o_ref[...] = (out * inv).astype(o_ref.dtype)


def _vmem_plan():
    """Chip-aware (live-tile budget, scoped-vmem limit) in bytes."""
    try:
        cap = int(pltpu.get_tpu_info().vmem_capacity_bytes)
    except Exception:
        cap = 64 * 1024 * 1024            # conservative fallback (v7x per-TC)
    if cap <= 64 * 1024 * 1024:           # v7x: 64 MiB physical per TC
        budget = 24 * 1024 * 1024
    else:                                  # v5e / v6e: 128 MiB physical
        budget = 48 * 1024 * 1024
    vmem_limit = min(budget + 16 * 1024 * 1024, (cap * 3) // 4)
    return budget, vmem_limit


def _pick_tb(B, C, D, budget_bytes):
    """Batch elements per grid step: as many as comfortably fit in VMEM."""
    # Per-batch footprint (bytes), including in-kernel intermediates:
    #   fused input tile (double-buffered)  : 2 * 3*C*D * 4 = 24*C*D
    #   output tile (double-buffered)       : 2 *   C*D * 4 =  8*C*D
    #   qs f32 + q/k/v bf16 copies + out f32: ~14*C*D
    #   s f32 + p f32 + p bf16              : ~10*C*C
    per_b = 48 * C * D + 12 * C * C
    per_b = int(per_b * 1.25) + 4096       # margin: (8,128) padding, scratch
    tb = max(1, min(B, budget_bytes // max(per_b, 1)))
    if B >= 2:
        # At least 2 grid steps so both v7x TensorCores get work (harmless on
        # single-TC v5e/v6e).
        tb = min(tb, max(1, B // 2))
    while B % tb:                          # keep the grid exact (no ragged step)
        tb -= 1
    return tb


def attention_forward(x, in_channels):
    """x: (B, 3*in_channels, D) -> (B, in_channels, D)."""
    B, three_c, D = x.shape
    C = in_channels
    assert three_c == 3 * C, "dim 1 must be 3 * in_channels"

    budget, vmem_limit = _vmem_plan()
    TB = _pick_tb(B, C, D, budget)
    grid = (B // TB,)

    # One fused (TB, 3*C, D) block per grid step: a single contiguous DMA that
    # carries q, k and v together; last two dims equal the full array dims so
    # the (8,128) block constraint is satisfied for any C, D.
    in_spec = pl.BlockSpec((TB, 3 * C, D), lambda b: (b, 0, 0))
    out_spec = pl.BlockSpec((TB, C, D), lambda b: (b, 0, 0))

    out = pl.pallas_call(
        _attention_kernel,
        out_shape=jax.ShapeDtypeStruct((B, C, D), x.dtype),
        grid_spec=pltpu.PrefetchScalarGridSpec(
            num_scalar_prefetch=0,
            grid=grid,
            in_specs=[in_spec],
            out_specs=out_spec,
        ),
        compiler_params=pltpu.CompilerParams(
            dimension_semantics=("parallel",),
            vmem_limit_bytes=vmem_limit),
    )(x)
    return out


def _reference(x, in_channels):
    C = in_channels
    q = x[:, 0 * C:1 * C, :]
    k = x[:, 1 * C:2 * C, :]
    v = x[:, 2 * C:3 * C, :]
    s = jnp.einsum("bcd,bed->bce", q, k) / math.sqrt(x.shape[-1])
    p = jax.nn.softmax(s, axis=-1)
    return jnp.einsum("bce,bed->bcd", p, v)


if __name__ == "__main__":
    # Small, deterministic example shapes: batch=2, in_channels=8, feature=32.
    B, C, D = 2, 8, 32
    key = jax.random.PRNGKey(0)
    x = jax.random.normal(key, (B, 3 * C, D), dtype=jnp.float32)

    out = attention_forward(x, in_channels=C)
    jax.block_until_ready(out)

    ref = _reference(x, in_channels=C)
    assert out.shape == (B, C, D)
    # Tolerance loosened vs f32 reference: bf16 MXU operands (~2^-8 relative
    # per product) plus the approx (EUP) reciprocal in the softmax
    # normalization; accumulation stays f32.
    assert jnp.allclose(out, ref, atol=2e-2, rtol=2e-2), (
        float(jnp.max(jnp.abs(out - ref))))

    print("KERNEL_OK")
</pallas_src>

<mosaic_0001>
module attributes {stable_mosaic.version = 11 : i64} {
  func.func @_attention_kernel(%arg0: i32, %arg1: memref<1x24x32xf32, #tpu.memory_space<vmem>>, %arg2: memref<1x8x32xf32, #tpu.memory_space<vmem>>) attributes {dimension_semantics = [#tpu.dimension_semantics<parallel>], iteration_bounds = array<i64: 2>, scalar_prefetch = 0 : i64, scratch_operands = 0 : i64, tpu.core_type = #tpu.core_type<tc>, window_params = [{transform_indices = @transform_0, window_bounds = array<i64: 1, 24, 32>}, {transform_indices = @transform_1, window_bounds = array<i64: 1, 8, 32>}]} {
    %c0 = arith.constant 0 : index
    %c0_0 = arith.constant 0 : index
    %c0_1 = arith.constant 0 : index
    %0 = vector.load %arg1[%c0, %c0_0, %c0_1] : memref<1x24x32xf32, #tpu.memory_space<vmem>>, vector<1x8x32xf32>
    %c0_2 = arith.constant 0 : index
    %c8 = arith.constant 8 : index
    %c0_3 = arith.constant 0 : index
    %1 = vector.load %arg1[%c0_2, %c8, %c0_3] : memref<1x24x32xf32, #tpu.memory_space<vmem>>, vector<1x8x32xf32>
    %c0_4 = arith.constant 0 : index
    %c16 = arith.constant 16 : index
    %c0_5 = arith.constant 0 : index
    %2 = vector.load %arg1[%c0_4, %c16, %c0_5] : memref<1x24x32xf32, #tpu.memory_space<vmem>>, vector<1x8x32xf32>
    %cst = arith.constant 0.176776692 : f32
    %3 = vector.broadcast %cst : f32 to vector<1x8x32xf32>
    %4 = arith.mulf %0, %3 : vector<1x8x32xf32>
    %5 = arith.truncf %4 : vector<1x8x32xf32> to vector<1x8x32xbf16>
    %6 = arith.truncf %1 : vector<1x8x32xf32> to vector<1x8x32xbf16>
    %cst_6 = arith.constant dense<0.000000e+00> : vector<1x8x8xf32>
    %7 = tpu.matmul %5, %6, %cst_6 {dimension_numbers = #tpu.dot_dimension_numbers<[2], [2], [1], [1], [0, 0, 0, 1, 1, 1], [0], [0]>} : vector<1x8x32xbf16>, vector<1x8x32xbf16>, vector<1x8x8xf32> -> vector<1x8x8xf32>
    %cst_7 = arith.constant dense<0xFF800000> : vector<1x8xf32>
    %8 = vector.multi_reduction <maximumf>, %7, %cst_7 [2] : vector<1x8x8xf32> to vector<1x8xf32>
    %9 = vector.shape_cast %8 : vector<1x8xf32> to vector<1x8x1xf32>
    %10 = vector.broadcast %9 : vector<1x8x1xf32> to vector<1x8x8xf32>
    %11 = arith.subf %7, %10 : vector<1x8x8xf32>
    %12 = math.exp %11 : vector<1x8x8xf32>
    %cst_8 = arith.constant dense<0.000000e+00> : vector<1x8xf32>
    %13 = vector.multi_reduction <add>, %12, %cst_8 [2] : vector<1x8x8xf32> to vector<1x8xf32>
    %14 = vector.shape_cast %13 : vector<1x8xf32> to vector<1x8x1xf32>
    %15 = arith.truncf %12 : vector<1x8x8xf32> to vector<1x8x8xbf16>
    %16 = arith.truncf %2 : vector<1x8x32xf32> to vector<1x8x32xbf16>
    %cst_9 = arith.constant dense<0.000000e+00> : vector<1x8x32xf32>
    %17 = tpu.matmul %15, %16, %cst_9 {dimension_numbers = #tpu.dot_dimension_numbers<[2], [1], [1], [2], [0, 0, 0, 1, 1, 2], [0], [0]>} : vector<1x8x8xbf16>, vector<1x8x32xbf16>, vector<1x8x32xf32> -> vector<1x8x32xf32>
    %18 = tpu.reciprocal %14 {approx = true} : vector<1x8x1xf32> -> vector<1x8x1xf32>
    %19 = vector.broadcast %18 : vector<1x8x1xf32> to vector<1x8x32xf32>
    %20 = arith.mulf %17, %19 : vector<1x8x32xf32>
    %c0_10 = arith.constant 0 : index
    %c0_11 = arith.constant 0 : index
    %c0_12 = arith.constant 0 : index
    %21 = vector.load %arg2[%c0_10, %c0_11, %c0_12] : memref<1x8x32xf32, #tpu.memory_space<vmem>>, vector<1x8x32xf32>
    tpu.vector_store %arg2[%c0_10, %c0_11, %c0_12], %20 {strides = array<i32>} : memref<1x8x32xf32, #tpu.memory_space<vmem>>, vector<1x8x32xf32>,
    return
  }
  func.func @transform_0(%arg0: i32) -> (i32, i32, i32) {
    %c0_i32 = arith.constant 0 : i32
    %c0_i32_0 = arith.constant 0 : i32
    %c0_i32_1 = arith.constant 0 : i32
    return %arg0, %c0_i32, %c0_i32_0 : i32, i32, i32
  }
  func.func @transform_1(%arg0: i32) -> (i32, i32, i32) {
    %c0_i32 = arith.constant 0 : i32
    %c0_i32_0 = arith.constant 0 : i32
    %c0_i32_1 = arith.constant 0 : i32
    return %arg0, %c0_i32, %c0_i32_0 : i32, i32, i32
  }
}

</mosaic_0001>

<llo_original>
// kernel: tpu_custom_call.1
$region0: #{tpu_custom_call.1}
  #allocation0 [shape = 'u32[]', space=smem, size = 0x4, offset = 0x4, fixed_abs, tag = 'smem constant byte address 0x4 - core index']
  #allocation1 [shape = 'u32[144,128]{1,0:T(1,128)}', space=vmem, size = 0x12000, scoped, tag = 'internal scratch']
  %s0 = inlined_call_operand.hbm [shape: f32[2,24,32], index: 0, kind: input, shape index: {}]
  %s1 = inlined_call_operand.hbm [shape: f32[2,8,32], index: 1, kind: output, shape index: {}]
  %s2 = sld [smem:[#allocation0]]
  $region41: #{tpu_custom_call.1} parent=0
    _
  %s4 = ssub.s32 1, %s2
  %s5 = scalar_select 0, %s4, %s2
  $region1: #{tpu_custom_call.1} parent=0
    #allocation2 [shape = 'u8[24576]{0}', space=vmem, size = 0x6000, scoped, tag = 'input window, operand 0']
    #allocation3 [shape = 's32[2]{0}', space=sflag, size = 0x8, scoped, tag = 'scoped memory for tpu_custom_call.1']
    #allocation4 [shape = 's32[2]{0}', space=sflag, size = 0x8, scoped, tag = 'scoped memory for tpu_custom_call.1']
    #allocation5 [shape = 'u8[8192]{0}', space=vmem, size = 0x2000, scoped, tag = 'output window, operand 0']
    %6 = vsyncpa [#allocation3], 0
    %s7 = scalar_lea.sflag [#allocation3], 1
    %8 = vsyncpa %s7, 0
    %9 = vsyncpa [#allocation4], 0
    %s10 = scalar_lea.sflag [#allocation4], 1
    %11 = vsyncpa %s10, 0
    loop: start=0, step=1, limit=4
    $region2: #{tpu_custom_call.1} parent=1 // loop_pre_header
      _
    $region3: #{tpu_custom_call.1} parent=1 // loop_header
      %s13 = sphi 0, %s17
      %p14 = scmp.ge.s32.totalorder %s13, 4
      %s23 = sphi 0, %s25
      %s26 = sphi 0, %s23
      %s27 = sphi 0, %s26
      %s43 = sphi 0, %s27
      %s49 = sphi 0, %s51
      %s52 = sphi 0, %s49
      %s53 = sphi 0, %s52
      %s69 = sphi 0, %s53
    $region4: #{tpu_custom_call.1} parent=1 // loop_header_branch
      %16 = sbr.rel (%p14) target = $region8
    $region5: #{tpu_custom_call.1} parent=1 // loop_body
      %s18 = ssub.s32 %s13, 1
      %s19 = ssub.s32 %s13, 2
      %s20 = sadd.s32 %s13, 1
      %s21 = ssub.s32 %s13, %s20
      %p22 = scmp.eq.s32.totalorder %s21, 0
      %s24 = sadd.s32 %s23, 1
      %s25 = scalar_select %p22, %s23, %s24
      %p28 = pneg %p22
      %p29 = scmp.eq.s32.totalorder %s13, 1
      %p30 = por %p28, %p29
      %p31 = scmp.ne.s32.totalorder %s23, %s26
      %p32 = scmp.eq.s32.totalorder %s13, 0
      %p33 = por %p31, %p32
      %p34 = scmp.ne.s32.totalorder %s23, %s26
      %p35 = scmp.eq.s32.totalorder %s18, 1
      %p36 = por %p34, %p35
      %p37 = scmp.ne.s32.totalorder %s26, %s27
      %p38 = scmp.eq.s32.totalorder %s18, 0
      %p39 = por %p37, %p38
      %p40 = scmp.ne.s32.totalorder %s26, %s27
      %p41 = scmp.eq.s32.totalorder %s19, 1
      %p42 = por %p40, %p41
      %p44 = scmp.ne.s32.totalorder %s27, %s43
      %p45 = scmp.eq.s32.totalorder %s19, 0
      %p46 = por %p44, %p45
      %s47 = ssub.s32 %s13, %s20
      %p48 = scmp.eq.s32.totalorder %s47, 0
      %s50 = sadd.s32 %s49, 1
      %s51 = scalar_select %p48, %s49, %s50
      %p54 = pneg %p48
      %p55 = scmp.eq.s32.totalorder %s13, 1
      %p56 = por %p54, %p55
      %p57 = scmp.ne.s32.totalorder %s49, %s52
      %p58 = scmp.eq.s32.totalorder %s13, 0
      %p59 = por %p57, %p58
      %p60 = scmp.ne.s32.totalorder %s49, %s52
      %p61 = scmp.eq.s32.totalorder %s18, 1
      %p62 = por %p60, %p61
      %p63 = scmp.ne.s32.totalorder %s52, %s53
      %p64 = scmp.eq.s32.totalorder %s18, 0
      %p65 = por %p63, %p64
      %p66 = scmp.ne.s32.totalorder %s52, %s53
      %p67 = scmp.eq.s32.totalorder %s19, 1
      %p68 = por %p66, %p67
      %p70 = scmp.ne.s32.totalorder %s53, %s69
      %p71 = scmp.eq.s32.totalorder %s19, 0
      %p72 = por %p70, %p71
      %p73 = scmp.le.s32.totalorder 1, %s13
      %p74 = scmp.lt.s32.totalorder %s13, 3
      %p75 = pnand %p73, %p74
      %p76 = pneg %p75
      // Predicated region
      $region9: #{tpu_custom_call.1} parent=5 // pred_check
        _
      $region10: #{tpu_custom_call.1} parent=5 // pred_check_branch
        %78 = sbr.rel (%p75) target = $region12
      $region11: #{tpu_custom_call.1} parent=5 // pred_region
        %s79 = ssub.s32 %s13, 1
      $region12: #{tpu_custom_call.1} parent=5 // pred_fallthru
        _
      %p80 = scmp.lt.s32.totalorder %s13, 2
      // Predicated region
      $region13: #{tpu_custom_call.1} parent=5 // pred_check
        %p81 = pneg %p80
      $region14: #{tpu_custom_call.1} parent=5 // pred_check_branch
        %83 = sbr.rel (%p81) target = $region16
      $region15: #{tpu_custom_call.1} parent=5 // pred_region
        // Predicated region
        $region17: #{tpu_custom_call.1} parent=15 // pred_check
          %p84 = pneg %p33
        $region18: #{tpu_custom_call.1} parent=15 // pred_check_branch
          %86 = sbr.rel (%p84) target = $region20
        $region19: #{tpu_custom_call.1} parent=15 // pred_region
          %s87 = sand.u32 %s23, 1
          %s88 = scalar_lea.sflag [#allocation3], %s87
          %s89 = sand.u32 %s23, 1
          %s90 = smul.addr %s89, 24
          %s91 = scalar_lea.vmem [#allocation2], %s90
          %s93 = ssub.s32 384, 384
          %94 = vsyncadd %s88, %s93
          %s95 = smul.addr %s13, 3
          %s96 = smul.addr %s95, 128
          %s97 = scalar_lea.hbm %s0, %s96
          %s98 = sshll.u32 %s91, 4
          %s99 = int_to_ptr.vmem [resolvable:$true] %s98
          %104 = dma.hbm_to_vmem [thread:$0]  %s97, 384, %s99, %s88, 128, 128, 8
        $region20: #{tpu_custom_call.1} parent=15 // pred_fallthru
          _
      $region16: #{tpu_custom_call.1} parent=5 // pred_fallthru
        _
      %p105 = scmp.le.s32.totalorder 1, %s13
      %p106 = scmp.lt.s32.totalorder %s13, 3
      %p107 = pnand %p105, %p106
      %p108 = pneg %p107
      // Predicated region
      $region21: #{tpu_custom_call.1} parent=5 // pred_check
        _
      $region22: #{tpu_custom_call.1} parent=5 // pred_check_branch
        %110 = sbr.rel (%p107) target = $region24
      $region23: #{tpu_custom_call.1} parent=5 // pred_region
        %s111 = ssub.s32 %s13, 1
        %s112 = sand.u32 %s26, 1
        %s113 = scalar_lea.sflag [#allocation3], %s112
        %s114 = sand.u32 %s26, 1
        %s115 = smul.addr %s114, 24
        %s116 = scalar_lea.vmem [#allocation2], %s115
        // Predicated region
        $region25: #{tpu_custom_call.1} parent=23 // pred_check
          %p117 = pneg %p39
        $region26: #{tpu_custom_call.1} parent=23 // pred_check_branch
          %119 = sbr.rel (%p117) target = $region28
        $region27: #{tpu_custom_call.1} parent=23 // pred_region
          %120 = dma.done %s113, 384
        $region28: #{tpu_custom_call.1} parent=23 // pred_fallthru
          _
        %s121 = sand.u32 %s26, 1
        %s122 = scalar_lea.sflag [#allocation3], %s121
        %s123 = sand.u32 %s26, 1
        %s124 = smul.addr %s123, 24
        %s125 = scalar_lea.vmem [#allocation2], %s124
        %p126 = pneg %p39
        %p127 = pneg %p36
        %p128 = pneg %p65
        %p129 = pneg %p62
        %s130 = sand.u32 %s52, 1
        %s131 = scalar_lea.sflag [#allocation4], %s130
        %s132 = sand.u32 %s52, 1
        %s133 = smul.addr %s132, 8
        %s134 = scalar_lea.vmem [#allocation5], %s133
        %v136 = vld [vmem:[%s116] sm:$0xff]
        %v137 = vld [vmem:[%s116 + $0x8] sm:$0xff]
        %v138 = vld [vmem:[%s116 + $0x10] sm:$0xff]
        %v139 = vmul.f32 %v136, 0.17677669
        %v140 = vpack.c.bf16 %v139, %v139
        %v141 = vpack.c.bf16 %v137, %v137
        %vm142 = vcmask 261120
        %v144 = vsel %vm142, %v140, 0
        %v147 = vsel %vm142, %v141, 0
        %149 = vmatprep.subr.bf16.mxu0 0
        %150 = vmatpush1.bf16.xpose.msra.mxu0 %v147
        %151 = vmatprep.subr.bf16.mxu0 0
        %152 = vmatpush1.bf16.xpose.msra.mxu0 0
        %153 = vmatprep.subr.bf16.mxu0 0
        %154 = vmatpush1.bf16.xpose.msra.mxu0 0
        %155 = vmatprep.subr.bf16.mxu0 0
        %156 = vmatpush1.bf16.xpose.msra.mxu0 0
        %157 = vmatprep.subr.bf16.mxu0 0
        %158 = vmatpush1.bf16.xpose.msra.mxu0 0
        %159 = vmatprep.subr.bf16.mxu0 0
        %160 = vmatpush1.bf16.xpose.msra.mxu0 0
        %161 = vmatprep.subr.bf16.mxu0 0
        %162 = vmatpush1.bf16.xpose.msra.mxu0 0
        %163 = vmatprep.subr.bf16.mxu0 0
        %164 = vmatpush1.bf16.xpose.msra.mxu0 0
        %165 = vmatprep.subr.bf16.mxu0 0
        %166 = vmatpush1.bf16.xpose.msra.mxu0 0
        %167 = vmatprep.subr.bf16.mxu0 0
        %168 = vmatpush1.bf16.xpose.msra.mxu0 0
        %169 = vmatprep.subr.bf16.mxu0 0
        %170 = vmatpush1.bf16.xpose.msra.mxu0 0
        %171 = vmatprep.subr.bf16.mxu0 0
        %172 = vmatpush1.bf16.xpose.msra.mxu0 0
        %173 = vmatprep.subr.bf16.mxu0 0
        %174 = vmatpush1.bf16.xpose.msra.mxu0 0
        %175 = vmatprep.subr.bf16.mxu0 0
        %176 = vmatpush1.bf16.xpose.msra.mxu0 0
        %177 = vmatprep.subr.bf16.mxu0 0
        %178 = vmatpush1.bf16.xpose.msra.mxu0 0
        %179 = vmatprep.subr.bf16.mxu0 0
        %180 = vmatpush1.bf16.xpose.msra.mxu0 0
        %181 = vmatprep.mubr.bf16.mxu0 0
        %182 = vmatmul.mubr.bf16.gmra.mrb[0].mxu0 %v144
        %v183 = vpop.f32.mrb[0].mxu0
        %v184 = vadd.f32 0.0, %v183
        %v185 = vpop.f32.mrb[0].mxu0
        %v186 = vpop.f32.mrb[0].mxu0
        %v187 = vpop.f32.mrb[0].mxu0
        %188 = vdwg.mxu0
        %vm189 = vcmask 64512
        %v190 = vsel %vm189, %v184, -inf
        %191 = vmax.xlane.f32.xlu0 %v190
        %v192 = vpop.xlane.xlu0 %191
        %v193 = vsub.f32 %v184, %v192
        %v194 = vmul.f32 %v193, 1.442695
        %v195 = vpow.pop %v194
        %v196 = vsel %vm189, %v195, 0.0
        %197 = vadd.xlane.f32.xlu0 %v196
        %v198 = vpop.xlane.xlu0 %197
        %v199 = vpack.c.bf16 %v195, %v195
        %v200 = vpack.c.bf16 %v138, %v138
        %v202 = vsel %vm189, %v199, 0
        %vm204 = vcmask 1043456
        %v206 = vsel %vm204, %v200, 0
        %208 = vmatprep.subr.bf16.mxu0 0
        %209 = vmatpush1.bf16.msra.mxu0 %v206
        %210 = vmatprep.subr.bf16.mxu0 0
        %211 = vmatpush1.bf16.msra.mxu0 0
        %212 = vmatprep.subr.bf16.mxu0 0
        %213 = vmatpush1.bf16.msra.mxu0 0
        %214 = vmatprep.subr.bf16.mxu0 0
        %215 = vmatpush1.bf16.msra.mxu0 0
        %216 = vmatprep.subr.bf16.mxu0 0
        %217 = vmatpush1.bf16.msra.mxu0 0
        %218 = vmatprep.subr.bf16.mxu0 0
        %219 = vmatpush1.bf16.msra.mxu0 0
        %220 = vmatprep.subr.bf16.mxu0 0
        %221 = vmatpush1.bf16.msra.mxu0 0
        %222 = vmatprep.subr.bf16.mxu0 0
        %223 = vmatpush1.bf16.msra.mxu0 0
        %224 = vmatprep.subr.bf16.mxu0 0
        %225 = vmatpush1.bf16.msra.mxu0 0
        %226 = vmatprep.subr.bf16.mxu0 0
        %227 = vmatpush1.bf16.msra.mxu0 0
        %228 = vmatprep.subr.bf16.mxu0 0
        %229 = vmatpush1.bf16.msra.mxu0 0
        %230 = vmatprep.subr.bf16.mxu0 0
        %231 = vmatpush1.bf16.msra.mxu0 0
        %232 = vmatprep.subr.bf16.mxu0 0
        %233 = vmatpush1.bf16.msra.mxu0 0
        %234 = vmatprep.subr.bf16.mxu0 0
        %235 = vmatpush1.bf16.msra.mxu0 0
        %236 = vmatprep.subr.bf16.mxu0 0
        %237 = vmatpush1.bf16.msra.mxu0 0
        %238 = vmatprep.subr.bf16.mxu0 0
        %239 = vmatpush1.bf16.msra.mxu0 0
        %240 = vmatprep.mubr.bf16.mxu0 0
        %241 = vmatmul.mubr.bf16.gmra.mrb[0].mxu0 %v202
        %v242 = vpop.f32.mrb[0].mxu0
        %v243 = vadd.f32 0.0, %v242
        %v244 = vpop.f32.mrb[0].mxu0
        %v245 = vpop.f32.mrb[0].mxu0
        %v246 = vpop.f32.mrb[0].mxu0
        %247 = vdwg.mxu0
        %v248 = vrcp.pop %v198
        %v249 = vmul.f32 %v243, %v248
        %250 = vst.msk [vmem:[%s134] sm:$0xff] %vm142, %v249
        %s251 = sand.u32 %s52, 1
        %s252 = scalar_lea.sflag [#allocation4], %s251
        %s253 = sand.u32 %s52, 1
        %s254 = smul.addr %s253, 8
        %s255 = scalar_lea.vmem [#allocation5], %s254
        // Predicated region
        $region29: #{tpu_custom_call.1} parent=23 // pred_check
          %p256 = pneg %p62
        $region30: #{tpu_custom_call.1} parent=23 // pred_check_branch
          %258 = sbr.rel (%p256) target = $region32
        $region31: #{tpu_custom_call.1} parent=23 // pred_region
          %s260 = ssub.s32 128, 128
          %261 = vsyncadd %s252, %s260
          %s262 = smul.addr %s18, 128
          %s263 = scalar_lea.hbm %s1, %s262
          %s265 = sshll.u32 %s255, 4
          %s266 = int_to_ptr.vmem [resolvable:$true] %s265
          %268 = dma.vmem_to_hbm [thread:$0]  %s266, 128, %s263, %s252
        $region32: #{tpu_custom_call.1} parent=23 // pred_fallthru
          _
      $region24: #{tpu_custom_call.1} parent=5 // pred_fallthru
        _
      %p269 = scmp.le.s32.totalorder 2, %s13
      // Predicated region
      $region33: #{tpu_custom_call.1} parent=5 // pred_check
        %p270 = pneg %p269
      $region34: #{tpu_custom_call.1} parent=5 // pred_check_branch
        %272 = sbr.rel (%p270) target = $region36
      $region35: #{tpu_custom_call.1} parent=5 // pred_region
        %s273 = ssub.s32 %s13, 2
        // Predicated region
        $region37: #{tpu_custom_call.1} parent=35 // pred_check
          %p274 = pneg %p68
        $region38: #{tpu_custom_call.1} parent=35 // pred_check_branch
          %276 = sbr.rel (%p274) target = $region40
        $region39: #{tpu_custom_call.1} parent=35 // pred_region
          %s277 = sand.u32 %s53, 1
          %s278 = scalar_lea.sflag [#allocation4], %s277
          %s279 = sand.u32 %s53, 1
          %s280 = smul.addr %s279, 8
          %s281 = scalar_lea.vmem [#allocation5], %s280
          %282 = dma.done %s278, 128
        $region40: #{tpu_custom_call.1} parent=35 // pred_fallthru
          _
      $region36: #{tpu_custom_call.1} parent=5 // pred_fallthru
        _
    $region6: #{tpu_custom_call.1} parent=1 // loop_footer
      %s17 = sadd.s32 1, %s13
    $region7: #{tpu_custom_call.1} parent=1 // loop_footer_branch
      %12 = sbr.rel target = $region3
    $region8: #{tpu_custom_call.1} parent=1 // loop_exit
      _
    %283 = vsyncpa [#allocation3], 1
    %s284 = scalar_lea.sflag [#allocation3], 1
    %285 = vsyncpa %s284, 1
    %286 = vsyncpa [#allocation4], 1
    %s287 = scalar_lea.sflag [#allocation4], 1
    %288 = vsyncpa %s287, 1

</llo_original>
